<compile_context>
chip_gen: v7x
topology: tpu7x:2x2x1
jax: 0.10.0
libtpu: 0.0.40
codegen_flags: <defaults>
</compile_context>

<pallas_src>
import jax
import jax.numpy as jnp
from jax.experimental import pallas as pl
from jax.experimental.pallas import tpu as pltpu


def _round_up(x, m):
    return (x + m - 1) // m * m


def segment_encoding_kernel(ids_ref, table_ref, out_ref):
    """ids_ref: (TR, pack) int32, slot p pre-shifted by p*T;
    table_ref: (pack*T, pack*D) block-diagonal table; out_ref: (TR, pack*D)."""
    tr = out_ref.shape[0]
    k = table_ref.shape[0]            # pack * type_num
    pack = ids_ref.shape[1]

    ids = ids_ref[...]                                            # (TR, pack) int32
    lane = jax.lax.broadcasted_iota(jnp.int32, (tr, k), 1)        # 0..K-1 per lane

    # Multi-hot: one bit per packed slot.  Slot p's shifted id lies in
    # [p*T, (p+1)*T), so different slots occupy disjoint lane ranges and a
    # plain OR of compares is an exact multi-hot (K is only pack*T lanes wide).
    hit = ids[:, 0:1] == lane
    for p in range(1, pack):                                      # unrolled, tiny
        hit = jnp.logical_or(hit, ids[:, p : p + 1] == lane)
    onehot = hit.astype(table_ref.dtype)                          # (TR, K)

    # Gather on the MXU: multi-hot x block-diagonal table -> packed embeddings.
    # HIGHEST precision keeps the f32 selection exact (bf16x3 passes).
    acc = jnp.dot(
        onehot,
        table_ref[...],
        preferred_element_type=jnp.float32,
        precision=jax.lax.Precision.HIGHEST,
    )                                                             # (TR, W) f32
    out_ref[...] = acc.astype(out_ref.dtype)


def segment_encoding(type_input, table, *, row_tile=2048):
    """type_input: (B, S) int ids; table: (type_num, d_model). Returns (B, S, d_model)."""
    B, S = type_input.shape
    T, D = table.shape
    N = B * S

    # Lane-dense packing: `pack` tokens per 128-lane output row when D divides 128.
    pack = (128 // D) if (0 < D <= 128 and 128 % D == 0) else 1
    W = pack * D
    K = pack * T

    R = -(-N // pack)                       # packed rows needed
    R8 = _round_up(max(R, 1), 8)            # minimal sublane-aligned pad (NOT padded to tile)
    Np = R8 * pack                          # tokens after padding

    ids = type_input.reshape(-1).astype(jnp.int32)
    # Out-of-range / negative ids -> sentinel that never matches any lane => zero row.
    ids = jnp.where((ids >= 0) & (ids < T), ids, -(K + 1))
    if Np != N:
        ids = jnp.pad(ids, (0, Np - N), constant_values=-(K + 1))
    # Pre-shift slot p by p*T so the kernel's multi-hot columns index the
    # block-diagonal table rows directly (fuses into this tiny id-prep pass).
    ids2d = ids.reshape(R8, pack) + (jnp.arange(pack, dtype=jnp.int32) * T)[None, :]

    # Block-diagonal table: row p*T + t holds table[t] in columns [p*D, (p+1)*D).
    if pack > 1:
        eye_p = jnp.eye(pack, dtype=table.dtype)
        table_bd = jnp.einsum("pq,td->ptqd", eye_p, table).reshape(K, W)
    else:
        table_bd = table

    TR = min(row_tile, R8)                  # both multiples of 8
    num_tiles = -(-R8 // TR)                # partial last block handled by Pallas

    out = pl.pallas_call(
        segment_encoding_kernel,
        out_shape=jax.ShapeDtypeStruct((R8, W), table.dtype),
        grid=(num_tiles,),
        in_specs=[
            pl.BlockSpec((TR, pack), lambda i: (i, 0)),   # ids tile
            pl.BlockSpec((K, W), lambda i: (0, 0)),       # table: resident, fetched once
        ],
        out_specs=pl.BlockSpec((TR, W), lambda i: (i, 0)),
        compiler_params=pltpu.CompilerParams(
            # TODO(synk): on v7x, verify both TensorCores run the grid; if not,
            # switch this axis to pltpu.CORE_PARALLEL.
            dimension_semantics=("parallel",),
            vmem_limit_bytes=32 * 1024 * 1024,
        ),
        cost_estimate=pl.CostEstimate(
            flops=2 * R8 * K * W,
            transcendentals=0,
            bytes_accessed=R8 * pack * 4 + R8 * W * 4 + K * W * 4,
        ),
    )(ids2d, table_bd)

    # Packed rows are token-major / dim-minor, so the flatten is contiguous.
    out_flat = out.reshape(R8 * W)
    if Np != N:                             # slice (extra pass) only when padding exists
        out_flat = out_flat[: N * D]
    return out_flat.reshape(B, S, D)


def init_segment_embeddings(key, type_num, d_model):
    # Matches SegmentEncoding.init_weights(): xavier_uniform_ on the weight,
    # with the padding_idx=0 row forced to zero (as nn.Embedding does).
    bound = (6.0 / (type_num + d_model)) ** 0.5
    w = jax.random.uniform(key, (type_num, d_model), jnp.float32, -bound, bound)
    w = w.at[0].set(0.0)
    return w


if __name__ == "__main__":
    key = jax.random.PRNGKey(0)
    k_w, k_ids = jax.random.split(key)

    type_num, d_model = 4, 32
    B, S = 2, 8

    table = init_segment_embeddings(k_w, type_num, d_model)
    type_input = jax.random.randint(k_ids, (B, S), 0, type_num, dtype=jnp.int32)

    out = segment_encoding(type_input, table)
    out = jax.block_until_ready(out)

    # Pure-JAX reference: plain embedding lookup.
    ref = table[type_input]
    assert out.shape == (B, S, d_model)
    assert jnp.allclose(out, ref, atol=1e-6)

    print("KERNEL_OK")
</pallas_src>

<mosaic_0001>
module attributes {stable_mosaic.version = 11 : i64} {
  func.func @segment_encoding_kernel(%arg0: i32, %arg1: memref<8x4xi32, #tpu.memory_space<vmem>>, %arg2: memref<16x128xf32, #tpu.memory_space<vmem>>, %arg3: memref<8x128xf32, #tpu.memory_space<vmem>>) attributes {dimension_semantics = [#tpu.dimension_semantics<parallel>], iteration_bounds = array<i64: 1>, scalar_prefetch = 0 : i64, scratch_operands = 0 : i64, tpu.core_type = #tpu.core_type<tc>, window_params = [{transform_indices = @transform_0, window_bounds = array<i64: 8, 4>}, {pipeline_mode = #tpu.pipeline_mode<synchronous>, transform_indices = @transform_1, window_bounds = array<i64: 16, 128>}, {transform_indices = @transform_2, window_bounds = array<i64: 8, 128>}]} {
    %c0 = arith.constant 0 : index
    %c0_0 = arith.constant 0 : index
    %0 = vector.load %arg1[%c0, %c0_0] : memref<8x4xi32, #tpu.memory_space<vmem>>, vector<8x4xi32>
    %1 = tpu.iota {dimensions = array<i32: 1>} : vector<8x16xi32>
    %2 = vector.extract_strided_slice %0 {offsets = [0, 0], sizes = [8, 1], strides = [1, 1]} : vector<8x4xi32> to vector<8x1xi32>
    %3 = vector.broadcast %2 : vector<8x1xi32> to vector<8x16xi32>
    %4 = arith.cmpi eq, %3, %1 : vector<8x16xi32>
    %5 = vector.extract_strided_slice %0 {offsets = [0, 1], sizes = [8, 1], strides = [1, 1]} : vector<8x4xi32> to vector<8x1xi32>
    %6 = vector.broadcast %5 : vector<8x1xi32> to vector<8x16xi32>
    %7 = arith.cmpi eq, %6, %1 : vector<8x16xi32>
    %8 = arith.ori %4, %7 : vector<8x16xi1>
    %9 = vector.extract_strided_slice %0 {offsets = [0, 2], sizes = [8, 1], strides = [1, 1]} : vector<8x4xi32> to vector<8x1xi32>
    %10 = vector.broadcast %9 : vector<8x1xi32> to vector<8x16xi32>
    %11 = arith.cmpi eq, %10, %1 : vector<8x16xi32>
    %12 = arith.ori %8, %11 : vector<8x16xi1>
    %13 = vector.extract_strided_slice %0 {offsets = [0, 3], sizes = [8, 1], strides = [1, 1]} : vector<8x4xi32> to vector<8x1xi32>
    %14 = vector.broadcast %13 : vector<8x1xi32> to vector<8x16xi32>
    %15 = arith.cmpi eq, %14, %1 : vector<8x16xi32>
    %16 = arith.ori %12, %15 : vector<8x16xi1>
    %17 = arith.extui %16 : vector<8x16xi1> to vector<8x16xi32>
    %18 = arith.sitofp %17 : vector<8x16xi32> to vector<8x16xf32>
    %c0_1 = arith.constant 0 : index
    %c0_2 = arith.constant 0 : index
    %19 = vector.load %arg2[%c0_1, %c0_2] : memref<16x128xf32, #tpu.memory_space<vmem>>, vector<16x128xf32>
    %cst = arith.constant dense<0.000000e+00> : vector<8x128xf32>
    %20 = tpu.matmul %18, %19, %cst {dimension_numbers = #tpu.dot_dimension_numbers<[1], [0], [0], [1], [0, 0, 1, 1], [], []>, precision = #tpu.contract_precision<fp32>} : vector<8x16xf32>, vector<16x128xf32>, vector<8x128xf32> -> vector<8x128xf32>
    %c0_3 = arith.constant 0 : index
    %c0_4 = arith.constant 0 : index
    %21 = vector.load %arg3[%c0_3, %c0_4] : memref<8x128xf32, #tpu.memory_space<vmem>>, vector<8x128xf32>
    tpu.vector_store %arg3[%c0_3, %c0_4], %20 {strides = array<i32>} : memref<8x128xf32, #tpu.memory_space<vmem>>, vector<8x128xf32>,
    return
  }
  func.func @transform_0(%arg0: i32) -> (i32, i32) {
    %c0_i32 = arith.constant 0 : i32
    %c0_i32_0 = arith.constant 0 : i32
    return %arg0, %c0_i32 : i32, i32
  }
  func.func @transform_1(%arg0: i32) -> (i32, i32) {
    %c0_i32 = arith.constant 0 : i32
    %c0_i32_0 = arith.constant 0 : i32
    %c0_i32_1 = arith.constant 0 : i32
    return %c0_i32, %c0_i32_0 : i32, i32
  }
  func.func @transform_2(%arg0: i32) -> (i32, i32) {
    %c0_i32 = arith.constant 0 : i32
    %c0_i32_0 = arith.constant 0 : i32
    return %arg0, %c0_i32 : i32, i32
  }
}

</mosaic_0001>

<llo_original>
// kernel: tpu_custom_call.1
$region0: #{tpu_custom_call.1}
  #allocation0 [shape = 'u32[]', space=smem, size = 0x4, offset = 0x4, fixed_abs, tag = 'smem constant byte address 0x4 - core index']
  #allocation1 [shape = 'u32[144,128]{1,0:T(1,128)}', space=vmem, size = 0x12000, scoped, tag = 'internal scratch']
  %s0 = inlined_call_operand.vmem [shape: s32[8,4], index: 0, kind: input, shape index: {}]
  %s1 = inlined_call_operand.hbm [shape: f32[16,128], index: 1, kind: input, shape index: {}]
  %s2 = inlined_call_operand.hbm [shape: f32[8,128], index: 2, kind: output, shape index: {}]
  %s3 = sld [smem:[#allocation0]]
  $region22: #{tpu_custom_call.1} parent=0
    _
  %s5 = ssub.s32 1, %s3
  %s6 = scalar_select 0, %s5, %s3
  $region1: #{tpu_custom_call.1} parent=0
    #allocation2 [shape = 'u8[8192]{0}', space=vmem, size = 0x2000, scoped, tag = 'input window, operand 1, single buffered']
    #allocation3 [shape = 's32[1]{0}', space=sflag, size = 0x4, scoped, tag = 'scoped memory for tpu_custom_call.1']
    #allocation4 [shape = 's32[1]{0}', space=sflag, size = 0x4, scoped, tag = 'scoped memory for tpu_custom_call.1']
    #allocation5 [shape = 'u8[4096]{0}', space=vmem, size = 0x1000, scoped, tag = 'output window, operand 0, single buffered']
    %7 = vsyncpa [#allocation3], 0
    %8 = vsyncpa [#allocation4], 0
    // Predicated region
    $region2: #{tpu_custom_call.1} parent=1 // pred_check
      _
    $region3: #{tpu_custom_call.1} parent=1 // pred_check_branch
      %10 = sbr.rel (0) target = $region5
    $region4: #{tpu_custom_call.1} parent=1 // pred_region
      _
    $region5: #{tpu_custom_call.1} parent=1 // pred_fallthru
      _
    // Predicated region
    $region6: #{tpu_custom_call.1} parent=1 // pred_check
      _
    $region7: #{tpu_custom_call.1} parent=1 // pred_check_branch
      %12 = sbr.rel (0) target = $region9
    $region8: #{tpu_custom_call.1} parent=1 // pred_region
      %s14 = ssub.s32 256, 256
      %15 = vsyncadd [#allocation3], %s14
      %s16 = sshll.u32 [#allocation2], 4
      %s17 = int_to_ptr.vmem [resolvable:$true] %s16
      %22 = dma.hbm_to_vmem [thread:$0]  %s1, 256, %s17, [#allocation3], 128, 128, 8
    $region9: #{tpu_custom_call.1} parent=1 // pred_fallthru
      _
    // Predicated region
    $region10: #{tpu_custom_call.1} parent=1 // pred_check
      _
    $region11: #{tpu_custom_call.1} parent=1 // pred_check_branch
      %24 = sbr.rel (0) target = $region13
    $region12: #{tpu_custom_call.1} parent=1 // pred_region
      %25 = dma.done [#allocation3], 256
    $region13: #{tpu_custom_call.1} parent=1 // pred_fallthru
      _
    %v26 = vld [vmem:[%s0] sm:$0xff]
    %v27 = vlaneseq
    %v28 = vand.u32 %v27, 127
    %29 = vset.pattern.permute.xlu0 0
    %30 = vperm.xlu0 %29, %v26
    %v31 = vpop.permute.xlu0 %30
    %vm32 = vcmp.eq.s32.totalorder %v31, %v28
    %33 = vset.pattern.permute.xlu0 1
    %34 = vperm.xlu0 %33, %v26
    %v35 = vpop.permute.xlu0 %34
    %vm36 = vcmp.eq.s32.totalorder %v35, %v28
    %vm37 = vmor %vm32, %vm36
    %38 = vset.pattern.permute.xlu0 2
    %39 = vperm.xlu0 %38, %v26
    %v40 = vpop.permute.xlu0 %39
    %vm41 = vcmp.eq.s32.totalorder %v40, %v28
    %vm42 = vmor %vm37, %vm41
    %43 = vset.pattern.permute.xlu0 3
    %44 = vperm.xlu0 %43, %v26
    %v45 = vpop.permute.xlu0 %44
    %vm46 = vcmp.eq.s32.totalorder %v45, %v28
    %vm47 = vmor %vm42, %vm46
    %v48 = vsel %vm47, 1, 0
    %v49 = vcvt.s32.f32 %v48
    %v50 = vld [vmem:[#allocation2] sm:$0xff]
    %v51 = vld [vmem:[#allocation2 + $0x8] sm:$0xff]
    %vm52 = vcmask 130048
    %v54 = vsel %vm52, %v49, 0
    %56 = vmatprep.subr.mxu0 0.0
    %v57 = vand.u32 %v50, 4294901760
    %58 = vmatpush1.msra.mxu0 %v57
    %59 = vmatprep.subr.mxu0 0.0
    %v60 = vand.u32 %v51, 4294901760
    %61 = vmatpush1.msra.mxu0 %v60
    %62 = vmatprep.subr.mxu0 0.0
    %63 = vmatpush1.msra.mxu0 0.0
    %64 = vmatprep.subr.mxu0 0.0
    %65 = vmatpush1.msra.mxu0 0.0
    %66 = vmatprep.subr.mxu0 0.0
    %67 = vmatpush1.msra.mxu0 0.0
    %68 = vmatprep.subr.mxu0 0.0
    %69 = vmatpush1.msra.mxu0 0.0
    %70 = vmatprep.subr.mxu0 0.0
    %71 = vmatpush1.msra.mxu0 0.0
    %72 = vmatprep.subr.mxu0 0.0
    %73 = vmatpush1.msra.mxu0 0.0
    %74 = vmatprep.subr.mxu0 0.0
    %75 = vmatpush1.msra.mxu0 0.0
    %76 = vmatprep.subr.mxu0 0.0
    %77 = vmatpush1.msra.mxu0 0.0
    %78 = vmatprep.subr.mxu0 0.0
    %79 = vmatpush1.msra.mxu0 0.0
    %80 = vmatprep.subr.mxu0 0.0
    %81 = vmatpush1.msra.mxu0 0.0
    %82 = vmatprep.subr.mxu0 0.0
    %83 = vmatpush1.msra.mxu0 0.0
    %84 = vmatprep.subr.mxu0 0.0
    %85 = vmatpush1.msra.mxu0 0.0
    %86 = vmatprep.subr.mxu0 0.0
    %87 = vmatpush1.msra.mxu0 0.0
    %88 = vmatprep.subr.mxu0 0.0
    %89 = vmatpush1.msra.mxu0 0.0
    %90 = vmatprep.subr.mxu0 0.0
    %91 = vmatpush1.msra.mxu0 0.0
    %92 = vmatprep.subr.mxu0 0.0
    %93 = vmatpush1.msra.mxu0 0.0
    %94 = vmatprep.subr.mxu0 0.0
    %95 = vmatpush1.msra.mxu0 0.0
    %96 = vmatprep.subr.mxu0 0.0
    %97 = vmatpush1.msra.mxu0 0.0
    %98 = vmatprep.subr.mxu0 0.0
    %99 = vmatpush1.msra.mxu0 0.0
    %100 = vmatprep.subr.mxu0 0.0
    %101 = vmatpush1.msra.mxu0 0.0
    %102 = vmatprep.subr.mxu0 0.0
    %103 = vmatpush1.msra.mxu0 0.0
    %104 = vmatprep.subr.mxu0 0.0
    %105 = vmatpush1.msra.mxu0 0.0
    %106 = vmatprep.subr.mxu0 0.0
    %107 = vmatpush1.msra.mxu0 0.0
    %108 = vmatprep.subr.mxu0 0.0
    %109 = vmatpush1.msra.mxu0 0.0
    %110 = vmatprep.subr.mxu0 0.0
    %111 = vmatpush1.msra.mxu0 0.0
    %112 = vmatprep.subr.mxu0 0.0
    %113 = vmatpush1.msra.mxu0 0.0
    %114 = vmatprep.subr.mxu0 0.0
    %115 = vmatpush1.msra.mxu0 0.0
    %116 = vmatprep.subr.mxu0 0.0
    %117 = vmatpush1.msra.mxu0 0.0
    %118 = vmatprep.subr.mxu0 0.0
    %119 = vmatpush1.msra.mxu0 0.0
    %120 = vmatprep.subr.mxu0 0.0
    %121 = vmatpush1.msra.mxu0 0.0
    %122 = vmatprep.mubr.f32.mxu0 0.0
    %v123 = vand.u32 %v54, 4294901760
    %v124 = vsub.f32 %v54, %v123
    %v125 = vand.u32 %v124, 4294901760
    %v126 = vsub.f32 %v124, %v125
    %v127 = vand.u32 %v126, 4294901760
    %128 = vmatmul.mubr.f32.gmra.mrb[0].mxu0 %v127
    %v129 = vpop.f32.mrb[0].mxu0
    %v130 = vadd.f32 0.0, %v129
    %v131 = vpop.f32.mrb[0].mxu0
    %132 = vdwg.mxu0
    %133 = vmatprep.subr.mxu0 0.0
    %v134 = vand.u32 %v50, 4294901760
    %v135 = vsub.f32 %v50, %v134
    %v136 = vand.u32 %v135, 4294901760
    %v137 = vsub.f32 %v135, %v136
    %v138 = vand.u32 %v137, 4294901760
    %139 = vmatpush1.msra.mxu0 %v138
    %140 = vmatprep.subr.mxu0 0.0
    %v141 = vand.u32 %v51, 4294901760
    %v142 = vsub.f32 %v51, %v141
    %v143 = vand.u32 %v142, 4294901760
    %v144 = vsub.f32 %v142, %v143
    %v145 = vand.u32 %v144, 4294901760
    %146 = vmatpush1.msra.mxu0 %v145
    %147 = vmatprep.subr.mxu0 0.0
    %148 = vmatpush1.msra.mxu0 0.0
    %149 = vmatprep.subr.mxu0 0.0
    %150 = vmatpush1.msra.mxu0 0.0
    %151 = vmatprep.subr.mxu0 0.0
    %152 = vmatpush1.msra.mxu0 0.0
    %153 = vmatprep.subr.mxu0 0.0
    %154 = vmatpush1.msra.mxu0 0.0
    %155 = vmatprep.subr.mxu0 0.0
    %156 = vmatpush1.msra.mxu0 0.0
    %157 = vmatprep.subr.mxu0 0.0
    %158 = vmatpush1.msra.mxu0 0.0
    %159 = vmatprep.subr.mxu0 0.0
    %160 = vmatpush1.msra.mxu0 0.0
    %161 = vmatprep.subr.mxu0 0.0
    %162 = vmatpush1.msra.mxu0 0.0
    %163 = vmatprep.subr.mxu0 0.0
    %164 = vmatpush1.msra.mxu0 0.0
    %165 = vmatprep.subr.mxu0 0.0
    %166 = vmatpush1.msra.mxu0 0.0
    %167 = vmatprep.subr.mxu0 0.0
    %168 = vmatpush1.msra.mxu0 0.0
    %169 = vmatprep.subr.mxu0 0.0
    %170 = vmatpush1.msra.mxu0 0.0
    %171 = vmatprep.subr.mxu0 0.0
    %172 = vmatpush1.msra.mxu0 0.0
    %173 = vmatprep.subr.mxu0 0.0
    %174 = vmatpush1.msra.mxu0 0.0
    %175 = vmatprep.subr.mxu0 0.0
    %176 = vmatpush1.msra.mxu0 0.0
    %177 = vmatprep.subr.mxu0 0.0
    %178 = vmatpush1.msra.mxu0 0.0
    %179 = vmatprep.subr.mxu0 0.0
    %180 = vmatpush1.msra.mxu0 0.0
    %181 = vmatprep.subr.mxu0 0.0
    %182 = vmatpush1.msra.mxu0 0.0
    %183 = vmatprep.subr.mxu0 0.0
    %184 = vmatpush1.msra.mxu0 0.0
    %185 = vmatprep.subr.mxu0 0.0
    %186 = vmatpush1.msra.mxu0 0.0
    %187 = vmatprep.subr.mxu0 0.0
    %188 = vmatpush1.msra.mxu0 0.0
    %189 = vmatprep.subr.mxu0 0.0
    %190 = vmatpush1.msra.mxu0 0.0
    %191 = vmatprep.subr.mxu0 0.0
    %192 = vmatpush1.msra.mxu0 0.0
    %193 = vmatprep.subr.mxu0 0.0
    %194 = vmatpush1.msra.mxu0 0.0
    %195 = vmatprep.subr.mxu0 0.0
    %196 = vmatpush1.msra.mxu0 0.0
    %197 = vmatprep.subr.mxu0 0.0
    %198 = vmatpush1.msra.mxu0 0.0
    %199 = vmatprep.subr.mxu0 0.0
    %200 = vmatpush1.msra.mxu0 0.0
    %201 = vmatprep.subr.mxu0 0.0
    %202 = vmatpush1.msra.mxu0 0.0
    %203 = vmatprep.subr.mxu0 0.0
    %204 = vmatpush1.msra.mxu0 0.0
    %205 = vmatprep.subr.mxu0 0.0
    %206 = vmatpush1.msra.mxu0 0.0
    %207 = vmatprep.mubr.f32.mxu0 0.0
    %v208 = vand.u32 %v54, 4294901760
    %209 = vmatmul.mubr.f32.gmra.mrb[0].mxu0 %v208
    %v210 = vpop.f32.mrb[0].mxu0
    %v211 = vadd.f32 %v130, %v210
    %v212 = vpop.f32.mrb[0].mxu0
    %213 = vdwg.mxu0
    %214 = vmatprep.subr.mxu0 0.0
    %v215 = vand.u32 %v50, 4294901760
    %v216 = vsub.f32 %v50, %v215
    %217 = vmatpush1.msra.mxu0 %v216
    %218 = vmatprep.subr.mxu0 0.0
    %v219 = vand.u32 %v51, 4294901760
    %v220 = vsub.f32 %v51, %v219
    %221 = vmatpush1.msra.mxu0 %v220
    %222 = vmatprep.subr.mxu0 0.0
    %223 = vmatpush1.msra.mxu0 0.0
    %224 = vmatprep.subr.mxu0 0.0
    %225 = vmatpush1.msra.mxu0 0.0
    %226 = vmatprep.subr.mxu0 0.0
    %227 = vmatpush1.msra.mxu0 0.0
    %228 = vmatprep.subr.mxu0 0.0
    %229 = vmatpush1.msra.mxu0 0.0
    %230 = vmatprep.subr.mxu0 0.0
    %231 = vmatpush1.msra.mxu0 0.0
    %232 = vmatprep.subr.mxu0 0.0
    %233 = vmatpush1.msra.mxu0 0.0
    %234 = vmatprep.subr.mxu0 0.0
    %235 = vmatpush1.msra.mxu0 0.0
    %236 = vmatprep.subr.mxu0 0.0
    %237 = vmatpush1.msra.mxu0 0.0
    %238 = vmatprep.subr.mxu0 0.0
    %239 = vmatpush1.msra.mxu0 0.0
    %240 = vmatprep.subr.mxu0 0.0
    %241 = vmatpush1.msra.mxu0 0.0
    %242 = vmatprep.subr.mxu0 0.0
    %243 = vmatpush1.msra.mxu0 0.0
    %244 = vmatprep.subr.mxu0 0.0
    %245 = vmatpush1.msra.mxu0 0.0
    %246 = vmatprep.subr.mxu0 0.0
    %247 = vmatpush1.msra.mxu0 0.0
    %248 = vmatprep.subr.mxu0 0.0
    %249 = vmatpush1.msra.mxu0 0.0
    %250 = vmatprep.subr.mxu0 0.0
    %251 = vmatpush1.msra.mxu0 0.0
    %252 = vmatprep.subr.mxu0 0.0
    %253 = vmatpush1.msra.mxu0 0.0
    %254 = vmatprep.subr.mxu0 0.0
    %255 = vmatpush1.msra.mxu0 0.0
    %256 = vmatprep.subr.mxu0 0.0
    %257 = vmatpush1.msra.mxu0 0.0
    %258 = vmatprep.subr.mxu0 0.0
    %259 = vmatpush1.msra.mxu0 0.0
    %260 = vmatprep.subr.mxu0 0.0
    %261 = vmatpush1.msra.mxu0 0.0
    %262 = vmatprep.subr.mxu0 0.0
    %263 = vmatpush1.msra.mxu0 0.0
    %264 = vmatprep.subr.mxu0 0.0
    %265 = vmatpush1.msra.mxu0 0.0
    %266 = vmatprep.subr.mxu0 0.0
    %267 = vmatpush1.msra.mxu0 0.0
    %268 = vmatprep.subr.mxu0 0.0
    %269 = vmatpush1.msra.mxu0 0.0
    %270 = vmatprep.subr.mxu0 0.0
    %271 = vmatpush1.msra.mxu0 0.0
    %272 = vmatprep.subr.mxu0 0.0
    %273 = vmatpush1.msra.mxu0 0.0
    %274 = vmatprep.subr.mxu0 0.0
    %275 = vmatpush1.msra.mxu0 0.0
    %276 = vmatprep.subr.mxu0 0.0
    %277 = vmatpush1.msra.mxu0 0.0
    %278 = vmatprep.subr.mxu0 0.0
    %279 = vmatpush1.msra.mxu0 0.0
    %280 = vmatprep.subr.mxu0 0.0
    %281 = vmatpush1.msra.mxu0 0.0
    %282 = vmatprep.mubr.f32.mxu0 0.0
    %v283 = vand.u32 %v54, 4294901760
    %v284 = vsub.f32 %v54, %v283
    %285 = vmatmul.mubr.f32.gmra.mrb[0].mxu0 %v284
    %v286 = vpop.f32.mrb[0].mxu0
    %v287 = vadd.f32 %v211, %v286
    %v288 = vpop.f32.mrb[0].mxu0
    %289 = vdwg.mxu0
    %290 = vmatprep.subr.mxu0 0.0
    %v291 = vand.u32 %v50, 4294901760
    %292 = vmatpush1.msra.mxu0 %v291
    %293 = vmatprep.subr.mxu0 0.0
    %v294 = vand.u32 %v51, 4294901760
    %295 = vmatpush1.msra.mxu0 %v294
    %296 = vmatprep.subr.mxu0 0.0
    %297 = vmatpush1.msra.mxu0 0.0
    %298 = vmatprep.subr.mxu0 0.0
    %299 = vmatpush1.msra.mxu0 0.0
    %300 = vmatprep.subr.mxu0 0.0
    %301 = vmatpush1.msra.mxu0 0.0
    %302 = vmatprep.subr.mxu0 0.0
    %303 = vmatpush1.msra.mxu0 0.0
    %304 = vmatprep.subr.mxu0 0.0
    %305 = vmatpush1.msra.mxu0 0.0
    %306 = vmatprep.subr.mxu0 0.0
    %307 = vmatpush1.msra.mxu0 0.0
    %308 = vmatprep.subr.mxu0 0.0
    %309 = vmatpush1.msra.mxu0 0.0
    %310 = vmatprep.subr.mxu0 0.0
    %311 = vmatpush1.msra.mxu0 0.0
    %312 = vmatprep.subr.mxu0 0.0
    %313 = vmatpush1.msra.mxu0 0.0
    %314 = vmatprep.subr.mxu0 0.0
    %315 = vmatpush1.msra.mxu0 0.0
    %316 = vmatprep.subr.mxu0 0.0
    %317 = vmatpush1.msra.mxu0 0.0
    %318 = vmatprep.subr.mxu0 0.0
    %319 = vmatpush1.msra.mxu0 0.0
    %320 = vmatprep.subr.mxu0 0.0
    %321 = vmatpush1.msra.mxu0 0.0
    %322 = vmatprep.subr.mxu0 0.0
    %323 = vmatpush1.msra.mxu0 0.0
    %324 = vmatprep.subr.mxu0 0.0
    %325 = vmatpush1.msra.mxu0 0.0
    %326 = vmatprep.subr.mxu0 0.0
    %327 = vmatpush1.msra.mxu0 0.0
    %328 = vmatprep.subr.mxu0 0.0
    %329 = vmatpush1.msra.mxu0 0.0
    %330 = vmatprep.subr.mxu0 0.0
    %331 = vmatpush1.msra.mxu0 0.0
    %332 = vmatprep.subr.mxu0 0.0
    %333 = vmatpush1.msra.mxu0 0.0
    %334 = vmatprep.subr.mxu0 0.0
    %335 = vmatpush1.msra.mxu0 0.0
    %336 = vmatprep.subr.mxu0 0.0
    %337 = vmatpush1.msra.mxu0 0.0
    %338 = vmatprep.subr.mxu0 0.0
    %339 = vmatpush1.msra.mxu0 0.0
    %340 = vmatprep.subr.mxu0 0.0
    %341 = vmatpush1.msra.mxu0 0.0
    %342 = vmatprep.subr.mxu0 0.0
    %343 = vmatpush1.msra.mxu0 0.0
    %344 = vmatprep.subr.mxu0 0.0
    %345 = vmatpush1.msra.mxu0 0.0
    %346 = vmatprep.subr.mxu0 0.0
    %347 = vmatpush1.msra.mxu0 0.0
    %348 = vmatprep.subr.mxu0 0.0
    %349 = vmatpush1.msra.mxu0 0.0
    %350 = vmatprep.subr.mxu0 0.0
    %351 = vmatpush1.msra.mxu0 0.0
    %352 = vmatprep.subr.mxu0 0.0
    %353 = vmatpush1.msra.mxu0 0.0
    %354 = vmatprep.subr.mxu0 0.0
    %355 = vmatpush1.msra.mxu0 0.0
    %356 = vmatprep.mubr.f32.mxu0 0.0
    %v357 = vand.u32 %v54, 4294901760
    %v358 = vsub.f32 %v54, %v357
    %v359 = vand.u32 %v358, 4294901760
    %360 = vmatmul.mubr.f32.gmra.mrb[0].mxu0 %v359
    %v361 = vpop.f32.mrb[0].mxu0
    %v362 = vadd.f32 %v287, %v361
    %v363 = vpop.f32.mrb[0].mxu0
    %364 = vdwg.mxu0
    %365 = vmatprep.subr.mxu0 0.0
    %v366 = vand.u32 %v50, 4294901760
    %v367 = vsub.f32 %v50, %v366
    %v368 = vand.u32 %v367, 4294901760
    %369 = vmatpush1.msra.mxu0 %v368
    %370 = vmatprep.subr.mxu0 0.0
    %v371 = vand.u32 %v51, 4294901760
    %v372 = vsub.f32 %v51, %v371
    %v373 = vand.u32 %v372, 4294901760
    %374 = vmatpush1.msra.mxu0 %v373
    %375 = vmatprep.subr.mxu0 0.0
    %376 = vmatpush1.msra.mxu0 0.0
    %377 = vmatprep.subr.mxu0 0.0
    %378 = vmatpush1.msra.mxu0 0.0
    %379 = vmatprep.subr.mxu0 0.0
    %380 = vmatpush1.msra.mxu0 0.0
    %381 = vmatprep.subr.mxu0 0.0
    %382 = vmatpush1.msra.mxu0 0.0
    %383 = vmatprep.subr.mxu0 0.0
    %384 = vmatpush1.msra.mxu0 0.0
    %385 = vmatprep.subr.mxu0 0.0
    %386 = vmatpush1.msra.mxu0 0.0
    %387 = vmatprep.subr.mxu0 0.0
    %388 = vmatpush1.msra.mxu0 0.0
    %389 = vmatprep.subr.mxu0 0.0
    %390 = vmatpush1.msra.mxu0 0.0
    %391 = vmatprep.subr.mxu0 0.0
    %392 = vmatpush1.msra.mxu0 0.0
    %393 = vmatprep.subr.mxu0 0.0
    %394 = vmatpush1.msra.mxu0 0.0
    %395 = vmatprep.subr.mxu0 0.0
    %396 = vmatpush1.msra.mxu0 0.0
    %397 = vmatprep.subr.mxu0 0.0
    %398 = vmatpush1.msra.mxu0 0.0
    %399 = vmatprep.subr.mxu0 0.0
    %400 = vmatpush1.msra.mxu0 0.0
    %401 = vmatprep.subr.mxu0 0.0
    %402 = vmatpush1.msra.mxu0 0.0
    %403 = vmatprep.subr.mxu0 0.0
    %404 = vmatpush1.msra.mxu0 0.0
    %405 = vmatprep.subr.mxu0 0.0
    %406 = vmatpush1.msra.mxu0 0.0
    %407 = vmatprep.subr.mxu0 0.0
    %408 = vmatpush1.msra.mxu0 0.0
    %409 = vmatprep.subr.mxu0 0.0
    %410 = vmatpush1.msra.mxu0 0.0
    %411 = vmatprep.subr.mxu0 0.0
    %412 = vmatpush1.msra.mxu0 0.0
    %413 = vmatprep.subr.mxu0 0.0
    %414 = vmatpush1.msra.mxu0 0.0
    %415 = vmatprep.subr.mxu0 0.0
    %416 = vmatpush1.msra.mxu0 0.0
    %417 = vmatprep.subr.mxu0 0.0
    %418 = vmatpush1.msra.mxu0 0.0
    %419 = vmatprep.subr.mxu0 0.0
    %420 = vmatpush1.msra.mxu0 0.0
    %421 = vmatprep.subr.mxu0 0.0
    %422 = vmatpush1.msra.mxu0 0.0
    %423 = vmatprep.subr.mxu0 0.0
    %424 = vmatpush1.msra.mxu0 0.0
    %425 = vmatprep.subr.mxu0 0.0
    %426 = vmatpush1.msra.mxu0 0.0
    %427 = vmatprep.subr.mxu0 0.0
    %428 = vmatpush1.msra.mxu0 0.0
    %429 = vmatprep.subr.mxu0 0.0
    %430 = vmatpush1.msra.mxu0 0.0
    %431 = vmatprep.subr.mxu0 0.0
    %432 = vmatpush1.msra.mxu0 0.0
    %433 = vmatprep.subr.mxu0 0.0
    %434 = vmatpush1.msra.mxu0 0.0
    %435 = vmatprep.mubr.f32.mxu0 0.0
    %v436 = vand.u32 %v54, 4294901760
    %437 = vmatmul.mubr.f32.gmra.mrb[0].mxu0 %v436
    %v438 = vpop.f32.mrb[0].mxu0
    %v439 = vadd.f32 %v362, %v438
    %v440 = vpop.f32.mrb[0].mxu0
    %441 = vdwg.mxu0
    %442 = vmatprep.subr.mxu0 0.0
    %v443 = vand.u32 %v50, 4294901760
    %444 = vmatpush1.msra.mxu0 %v443
    %445 = vmatprep.subr.mxu0 0.0
    %v446 = vand.u32 %v51, 4294901760
    %447 = vmatpush1.msra.mxu0 %v446
    %448 = vmatprep.subr.mxu0 0.0
    %449 = vmatpush1.msra.mxu0 0.0
    %450 = vmatprep.subr.mxu0 0.0
    %451 = vmatpush1.msra.mxu0 0.0
    %452 = vmatprep.subr.mxu0 0.0
    %453 = vmatpush1.msra.mxu0 0.0
    %454 = vmatprep.subr.mxu0 0.0
    %455 = vmatpush1.msra.mxu0 0.0
    %456 = vmatprep.subr.mxu0 0.0
    %457 = vmatpush1.msra.mxu0 0.0
    %458 = vmatprep.subr.mxu0 0.0
    %459 = vmatpush1.msra.mxu0 0.0
    %460 = vmatprep.subr.mxu0 0.0
    %461 = vmatpush1.msra.mxu0 0.0
    %462 = vmatprep.subr.mxu0 0.0
    %463 = vmatpush1.msra.mxu0 0.0
    %464 = vmatprep.subr.mxu0 0.0
    %465 = vmatpush1.msra.mxu0 0.0
    %466 = vmatprep.subr.mxu0 0.0
    %467 = vmatpush1.msra.mxu0 0.0
    %468 = vmatprep.subr.mxu0 0.0
    %469 = vmatpush1.msra.mxu0 0.0
    %470 = vmatprep.subr.mxu0 0.0
    %471 = vmatpush1.msra.mxu0 0.0
    %472 = vmatprep.subr.mxu0 0.0
    %473 = vmatpush1.msra.mxu0 0.0
    %474 = vmatprep.subr.mxu0 0.0
    %475 = vmatpush1.msra.mxu0 0.0
    %476 = vmatprep.subr.mxu0 0.0
    %477 = vmatpush1.msra.mxu0 0.0
    %478 = vmatprep.subr.mxu0 0.0
    %479 = vmatpush1.msra.mxu0 0.0
    %480 = vmatprep.subr.mxu0 0.0
    %481 = vmatpush1.msra.mxu0 0.0
    %482 = vmatprep.subr.mxu0 0.0
    %483 = vmatpush1.msra.mxu0 0.0
    %484 = vmatprep.subr.mxu0 0.0
    %485 = vmatpush1.msra.mxu0 0.0
    %486 = vmatprep.subr.mxu0 0.0
    %487 = vmatpush1.msra.mxu0 0.0
    %488 = vmatprep.subr.mxu0 0.0
    %489 = vmatpush1.msra.mxu0 0.0
    %490 = vmatprep.subr.mxu0 0.0
    %491 = vmatpush1.msra.mxu0 0.0
    %492 = vmatprep.subr.mxu0 0.0
    %493 = vmatpush1.msra.mxu0 0.0
    %494 = vmatprep.subr.mxu0 0.0
    %495 = vmatpush1.msra.mxu0 0.0
    %496 = vmatprep.subr.mxu0 0.0
    %497 = vmatpush1.msra.mxu0 0.0
    %498 = vmatprep.subr.mxu0 0.0
    %499 = vmatpush1.msra.mxu0 0.0
    %500 = vmatprep.subr.mxu0 0.0
    %501 = vmatpush1.msra.mxu0 0.0
    %502 = vmatprep.subr.mxu0 0.0
    %503 = vmatpush1.msra.mxu0 0.0
    %504 = vmatprep.subr.mxu0 0.0
    %505 = vmatpush1.msra.mxu0 0.0
    %506 = vmatprep.subr.mxu0 0.0
    %507 = vmatpush1.msra.mxu0 0.0
    %508 = vmatprep.mubr.f32.mxu0 0.0
    %v509 = vand.u32 %v54, 4294901760
    %510 = vmatmul.mubr.f32.gmra.mrb[0].mxu0 %v509
    %v511 = vpop.f32.mrb[0].mxu0
    %v512 = vadd.f32 %v439, %v511
    %v513 = vpop.f32.mrb[0].mxu0
    %514 = vdwg.mxu0
    %515 = vst [vmem:[#allocation5] sm:$0xff] %v512
    // Predicated region
    $region14: #{tpu_custom_call.1} parent=1 // pred_check
      _
    $region15: #{tpu_custom_call.1} parent=1 // pred_check_branch
      %517 = sbr.rel (0) target = $region17
    $region16: #{tpu_custom_call.1} parent=1 // pred_region
      %s519 = ssub.s32 128, 128
      %520 = vsyncadd [#allocation4], %s519
      %s522 = sshll.u32 [#allocation5], 4
      %s523 = int_to_ptr.vmem [resolvable:$true] %s522
      %525 = dma.vmem_to_hbm [thread:$0]  %s523, 128, %s2, [#allocation4]
    $region17: #{tpu_custom_call.1} parent=1 // pred_fallthru
      _
    // Predicated region
    $region18: #{tpu_custom_call.1} parent=1 // pred_check
      _
    $region19: #{tpu_custom_call.1} parent=1 // pred_check_branch
      %527 = sbr.rel (0) target = $region21
    $region20: #{tpu_custom_call.1} parent=1 // pred_region
      %528 = dma.done [#allocation4], 128
    $region21: #{tpu_custom_call.1} parent=1 // pred_fallthru
      _
    %529 = vsyncpa [#allocation3], 1
    %530 = vsyncpa [#allocation4], 1

</llo_original>
